<compile_context>
chip_gen: v6e
topology: v6e:2x2x1
jax: 0.10.0
libtpu: 0.0.40
codegen_flags: <defaults>
</compile_context>

<pallas_src>
import math

import jax
import jax.numpy as jnp
from jax.experimental import pallas as pl
from jax.experimental.pallas import tpu as pltpu


_LANE = 128
_TARGET_BLOCK_BYTES = 4 << 20    # ~4 MiB per block (amortizes ~0.35us/step overhead)
_VMEM_LIMIT_BYTES = 32 << 20     # 2 in-bufs + 2 out-bufs * 4 MiB = 16 MiB, 2x headroom


# ---------------------------------------------------------------------------
# Backward kernel: grad_input = grad_output * coeff
# ---------------------------------------------------------------------------
def _scale_kernel(coeff_ref, g_ref, o_ref):
    # coeff is a (1,) f32 scalar in SMEM; cast once to the grad dtype so bf16
    # grads multiply natively (v6e/v7x have bf16 VALU).
    c = coeff_ref[0].astype(o_ref.dtype)
    o_ref[...] = g_ref[...] * c


def _block_dims(rows, cols, dtype):
    """Pick (tile_rows, tile_cols) for a (rows, cols) slab.

    - trailing dim kept at full extent (layout-safe) unless it is huge and
      128-aligned, in which case it is tiled in 128-multiples;
    - row tile is a multiple of the packed-sublane count (8 f32 / 16 bf16 / 32 i8)
      sized to ~_TARGET_BLOCK_BYTES, with a >=2-block split so a v7x "parallel"
      grid axis can feed both TensorCores.
    """
    itemsize = jnp.dtype(dtype).itemsize
    pack = max(8, 32 // itemsize)
    budget_elems = max(1, _TARGET_BLOCK_BYTES // itemsize)

    if cols % _LANE == 0 and cols * pack > budget_elems:
        tile_cols = max(_LANE, (budget_elems // pack // _LANE) * _LANE)
        tile_cols = min(tile_cols, cols)
    else:
        # TODO(synk): a very large, non-128-aligned trailing dim is not tiled here;
        # fine for typical conv/feature shapes.
        tile_cols = cols

    tile_rows = max(pack, (budget_elems // max(tile_cols, 1) // pack) * pack)
    if tile_rows >= rows:
        if rows > 2 * pack:
            half = (rows + 1) // 2
            tile_rows = ((half + pack - 1) // pack) * pack   # >=2 blocks, pack-aligned
        else:
            tile_rows = rows                                 # full extent (always legal)
    return tile_rows, tile_cols


def _scale_pallas(g2d, coeff):
    rows, cols = g2d.shape
    tile_rows, tile_cols = _block_dims(rows, cols, g2d.dtype)
    grid = (pl.cdiv(rows, tile_rows), pl.cdiv(cols, tile_cols))
    coeff_arr = jnp.asarray(coeff, dtype=jnp.float32).reshape((1,))
    return pl.pallas_call(
        _scale_kernel,
        out_shape=jax.ShapeDtypeStruct((rows, cols), g2d.dtype),
        grid=grid,
        in_specs=[
            pl.BlockSpec(memory_space=pltpu.MemorySpace.SMEM),         # coeff scalar
            pl.BlockSpec((tile_rows, tile_cols), lambda i, j: (i, j)),  # grad tile
        ],
        out_specs=pl.BlockSpec((tile_rows, tile_cols), lambda i, j: (i, j)),
        input_output_aliases={1: 0},   # reuse grad-output buffer for grad-input
        compiler_params=pltpu.CompilerParams(
            dimension_semantics=("parallel", "parallel"),
            vmem_limit_bytes=_VMEM_LIMIT_BYTES,
        ),
    )(coeff_arr, g2d)


def _apply_scale(g, coeff):
    """coeff * g with only a layout-safe leading-dim collapse (no pad, no relayout)."""
    orig_shape = g.shape
    if g.ndim == 0:
        g2d = g.reshape(1, 1)
    elif g.ndim == 1:
        g2d = g.reshape(1, g.shape[0])
    else:
        g2d = g.reshape(-1, g.shape[-1])
    y = _scale_pallas(g2d, coeff)
    return y.reshape(orig_shape)


# ---------------------------------------------------------------------------
# custom_vjp: identity forward (no kernel, no HBM copy), coeff-scaled gradient
# ---------------------------------------------------------------------------
@jax.custom_vjp
def warm_start_gradient(x, coeff):
    del coeff            # forward is exactly identity; coeff only scales the gradient
    return x


def _ws_fwd(x, coeff):
    return x, coeff


def _ws_bwd(coeff, g):
    # Matches the PyTorch (grad_output * coeff, None) semantics.
    return _apply_scale(g, coeff), jnp.zeros_like(coeff)


warm_start_gradient.defvjp(_ws_fwd, _ws_bwd)


# ---------------------------------------------------------------------------
# Module wrapper (host-side lambda schedule, same as the PyTorch layer)
# ---------------------------------------------------------------------------
class WarmStartGradientLayer:
    """JAX/Pallas port of WarmStartGradientLayer (identity forward + warm-start grad)."""

    def __init__(self, alpha=1.0, lo=0.0, hi=1.0, max_iters=1000, auto_step=False):
        self.alpha = float(alpha)
        self.lo = float(lo)
        self.hi = float(hi)
        self.max_iters = float(max_iters)
        self.iter_num = 0
        self.auto_step = auto_step

    def _coeff(self) -> float:
        return float(
            2.0 * (self.hi - self.lo)
            / (1.0 + math.exp(-self.alpha * self.iter_num / self.max_iters))
            - (self.hi - self.lo)
            + self.lo
        )

    def step(self):
        self.iter_num += 1

    def __call__(self, x: jax.Array) -> jax.Array:
        coeff = self._coeff()
        if self.auto_step:
            self.step()
        # Forward is a pure pass-through (no Pallas call, no HBM traffic);
        # the Pallas scale kernel only runs on the backward pass.
        return warm_start_gradient(x, jnp.asarray(coeff, dtype=jnp.float32))


if __name__ == "__main__":
    key = jax.random.PRNGKey(0)
    # Small NCHW conv-style feature map.
    x = jax.random.normal(key, (2, 4, 16, 16), dtype=jnp.float32)

    layer = WarmStartGradientLayer(alpha=1.0, lo=0.0, hi=1.0, max_iters=1000,
                                   auto_step=False)

    # Forward: exact identity (no kernel needed).
    out = jax.block_until_ready(layer(x))
    assert out.shape == x.shape, (out.shape, x.shape)
    assert out.dtype == x.dtype, (out.dtype, x.dtype)
    assert bool(jnp.allclose(out, x)), "forward must be identity"

    # Run the Pallas scale kernel once directly (smoke test).
    y = jax.block_until_ready(_apply_scale(x, jnp.float32(0.73)))
    assert bool(jnp.allclose(y, x * 0.73, rtol=1e-6, atol=1e-6)), \
        "scale kernel must compute coeff * g"

    # Backward through the layer: dR/dx = coeff * I  (exercises the Pallas kernel).
    layer.iter_num = 500
    coeff = layer._coeff()
    g = jax.grad(lambda xx: jnp.sum(layer(xx)))(x)
    g = jax.block_until_ready(g)
    assert bool(jnp.allclose(g, jnp.full_like(x, coeff), rtol=1e-5, atol=1e-6)), \
        "gradient must be coeff * ones"

    print("KERNEL_OK")
</pallas_src>

<mosaic_0001>
module attributes {stable_mosaic.version = 11 : i64} {
  func.func @_scale_kernel(%arg0: i32, %arg1: i32, %arg2: memref<1xf32, #tpu.memory_space<smem>>, %arg3: memref<64x16xf32, #tpu.memory_space<vmem>>, %arg4: memref<64x16xf32, #tpu.memory_space<vmem>>) attributes {dimension_semantics = [#tpu.dimension_semantics<parallel>, #tpu.dimension_semantics<parallel>], iteration_bounds = array<i64: 2, 1>, scalar_prefetch = 0 : i64, scratch_operands = 0 : i64, tpu.core_type = #tpu.core_type<tc>, window_params = [{transform_indices = @transform_0, window_bounds = array<i64: 1>}, {transform_indices = @transform_1, window_bounds = array<i64: 64, 16>}, {transform_indices = @transform_2, window_bounds = array<i64: 64, 16>}]} {
    %c0 = arith.constant 0 : index
    %0 = memref.load %arg2[%c0] : memref<1xf32, #tpu.memory_space<smem>>
    %c0_0 = arith.constant 0 : index
    %c0_1 = arith.constant 0 : index
    %1 = vector.load %arg3[%c0_0, %c0_1] : memref<64x16xf32, #tpu.memory_space<vmem>>, vector<64x16xf32>
    %2 = vector.broadcast %0 : f32 to vector<64x16xf32>
    %3 = arith.mulf %1, %2 : vector<64x16xf32>
    %c0_2 = arith.constant 0 : index
    %c0_3 = arith.constant 0 : index
    %4 = vector.load %arg4[%c0_2, %c0_3] : memref<64x16xf32, #tpu.memory_space<vmem>>, vector<64x16xf32>
    tpu.vector_store %arg4[%c0_2, %c0_3], %3 {strides = array<i32>} : memref<64x16xf32, #tpu.memory_space<vmem>>, vector<64x16xf32>,
    return
  }
  func.func @transform_0(%arg0: i32, %arg1: i32) -> i32 {
    %c0_i32 = arith.constant 0 : i32
    %c0_i32_0 = arith.constant 0 : i32
    return %c0_i32 : i32
  }
  func.func @transform_1(%arg0: i32, %arg1: i32) -> (i32, i32) {
    %c0_i32 = arith.constant 0 : i32
    return %arg0, %arg1 : i32, i32
  }
  func.func @transform_2(%arg0: i32, %arg1: i32) -> (i32, i32) {
    %c0_i32 = arith.constant 0 : i32
    return %arg0, %arg1 : i32, i32
  }
}

</mosaic_0001>

<llo_original>
// kernel: tpu_custom_call.1
$region0: #{tpu_custom_call.1}
  #allocation0 [shape = 'u32[]', space=smem, size = 0x4, offset = 0x4, fixed_abs, tag = 'smem constant byte address 0x4 - core index']
  #allocation1 [shape = 'u32[144,128]{1,0:T(1,128)}', space=vmem, size = 0x12000, scoped, tag = 'internal scratch']
  #allocation2 [shape = 'f32[1]{0:T(128)S(6)}', space=smem, size = 0x200, scoped, tag = 'scoped memory for tpu_custom_call.1']
  %s0 = inlined_call_operand.<no memory space> [shape: f32[1], index: 0, kind: input, shape index: {}]
  %s1 = inlined_call_operand.vmem [shape: f32[128,16], index: 1, kind: input, shape index: {}, may-alias: {1,2}]
  %s2 = inlined_call_operand.vmem [shape: f32[128,16], index: 2, kind: output, shape index: {}, may-alias: {1,2}]
  %s3 = sld [smem:[#allocation0]]
  $region41: #{tpu_custom_call.1} parent=0
    _
  %s5 = ssub.s32 1, %s3
  %s6 = scalar_select 0, %s5, %s3
  %7 = sst [smem:[#allocation2]] %s0
  loop: start=0, step=1, limit=4
  $region2: #{tpu_custom_call.1} parent=0 // loop_pre_header
    _
  $region3: #{tpu_custom_call.1} parent=0 // loop_header
    %s9 = sphi 0, %s13
    %p10 = scmp.ge.s32.totalorder %s9, 4
    %s16 = sphi 0, %s28
    %s17 = sphi 0, %s24
    %s18 = sphi 0, %s16
    %s19 = sphi 0, %s17
    %s20 = sphi 0, %s18
    %s21 = sphi 0, %s19
    %s29 = sphi 0, %s29
    %s31 = sphi 0, %s29
    %s32 = sphi 0, %s31
    %s46 = sphi 0, %s32
    %s54 = sphi 0, %s56
    %s57 = sphi 0, %s54
    %s58 = sphi 0, %s57
    %s74 = sphi 0, %s58
    %s82 = sphi 0, %s84
    %s85 = sphi 0, %s82
    %s86 = sphi 0, %s85
    %s102 = sphi 0, %s86
  $region4: #{tpu_custom_call.1} parent=0 // loop_header_branch
    %12 = sbr.rel (%p10) target = $region8
  $region5: #{tpu_custom_call.1} parent=0 // loop_body
    %s14 = ssub.s32 %s9, 1
    %s15 = ssub.s32 %s9, 2
    %s22 = sadd.s32 1, %s17
    %p23 = scmp.ge.s32.totalorder %s22, 1
    %s24 = scalar_select %p23, 0, %s22
    %s25 = sadd.s32 1, %s16
    %s26 = scalar_select %p23, %s25, %s16
    %p27 = scmp.ge.s32.totalorder %s26, 2
    %s28 = scalar_select %p27, 0, %s26
    %s30 = sadd.s32 %s29, 1
    %p33 = scmp.eq.s32.totalorder %s9, 1
    %p34 = scmp.ne.s32.totalorder %s29, %s31
    %p35 = scmp.eq.s32.totalorder %s9, 0
    %p36 = por %p34, %p35
    %p37 = scmp.ne.s32.totalorder %s29, %s31
    %p38 = scmp.eq.s32.totalorder %s14, 1
    %p39 = por %p37, %p38
    %p40 = scmp.ne.s32.totalorder %s31, %s32
    %p41 = scmp.eq.s32.totalorder %s14, 0
    %p42 = por %p40, %p41
    %p43 = scmp.ne.s32.totalorder %s31, %s32
    %p44 = scmp.eq.s32.totalorder %s15, 1
    %p45 = por %p43, %p44
    %p47 = scmp.ne.s32.totalorder %s32, %s46
    %p48 = scmp.eq.s32.totalorder %s15, 0
    %p49 = por %p47, %p48
    %s50 = ssub.s32 %s16, %s28
    %s51 = ssub.s32 %s17, %s24
    %s52 = sor.u32 %s50, %s51
    %p53 = scmp.eq.s32.totalorder %s52, 0
    %s55 = sadd.s32 %s54, 1
    %s56 = scalar_select %p53, %s54, %s55
    %p59 = pneg %p53
    %p60 = scmp.eq.s32.totalorder %s9, 1
    %p61 = por %p59, %p60
    %p62 = scmp.ne.s32.totalorder %s54, %s57
    %p63 = scmp.eq.s32.totalorder %s9, 0
    %p64 = por %p62, %p63
    %p65 = scmp.ne.s32.totalorder %s54, %s57
    %p66 = scmp.eq.s32.totalorder %s14, 1
    %p67 = por %p65, %p66
    %p68 = scmp.ne.s32.totalorder %s57, %s58
    %p69 = scmp.eq.s32.totalorder %s14, 0
    %p70 = por %p68, %p69
    %p71 = scmp.ne.s32.totalorder %s57, %s58
    %p72 = scmp.eq.s32.totalorder %s15, 1
    %p73 = por %p71, %p72
    %p75 = scmp.ne.s32.totalorder %s58, %s74
    %p76 = scmp.eq.s32.totalorder %s15, 0
    %p77 = por %p75, %p76
    %s78 = ssub.s32 %s16, %s28
    %s79 = ssub.s32 %s17, %s24
    %s80 = sor.u32 %s78, %s79
    %p81 = scmp.eq.s32.totalorder %s80, 0
    %s83 = sadd.s32 %s82, 1
    %s84 = scalar_select %p81, %s82, %s83
    %p87 = pneg %p81
    %p88 = scmp.eq.s32.totalorder %s9, 1
    %p89 = por %p87, %p88
    %p90 = scmp.ne.s32.totalorder %s82, %s85
    %p91 = scmp.eq.s32.totalorder %s9, 0
    %p92 = por %p90, %p91
    %p93 = scmp.ne.s32.totalorder %s82, %s85
    %p94 = scmp.eq.s32.totalorder %s14, 1
    %p95 = por %p93, %p94
    %p96 = scmp.ne.s32.totalorder %s85, %s86
    %p97 = scmp.eq.s32.totalorder %s14, 0
    %p98 = por %p96, %p97
    %p99 = scmp.ne.s32.totalorder %s85, %s86
    %p100 = scmp.eq.s32.totalorder %s15, 1
    %p101 = por %p99, %p100
    %p103 = scmp.ne.s32.totalorder %s86, %s102
    %p104 = scmp.eq.s32.totalorder %s15, 0
    %p105 = por %p103, %p104
    %p106 = scmp.le.s32.totalorder 1, %s9
    %p107 = scmp.lt.s32.totalorder %s9, 3
    %p108 = pnand %p106, %p107
    %p109 = pneg %p108
    // Predicated region
    $region9: #{tpu_custom_call.1} parent=5 // pred_check
      _
    $region10: #{tpu_custom_call.1} parent=5 // pred_check_branch
      %111 = sbr.rel (%p108) target = $region12
    $region11: #{tpu_custom_call.1} parent=5 // pred_region
      %s112 = ssub.s32 %s9, 1
      // Predicated region
      $region13: #{tpu_custom_call.1} parent=11 // pred_check
        %p113 = pneg %p42
      $region14: #{tpu_custom_call.1} parent=11 // pred_check_branch
        %115 = sbr.rel (%p113) target = $region16
      $region15: #{tpu_custom_call.1} parent=11 // pred_region
        _
      $region16: #{tpu_custom_call.1} parent=11 // pred_fallthru
        _
    $region12: #{tpu_custom_call.1} parent=5 // pred_fallthru
      _
    %p116 = scmp.lt.s32.totalorder %s9, 2
    // Predicated region
    $region17: #{tpu_custom_call.1} parent=5 // pred_check
      %p117 = pneg %p116
    $region18: #{tpu_custom_call.1} parent=5 // pred_check_branch
      %119 = sbr.rel (%p117) target = $region20
    $region19: #{tpu_custom_call.1} parent=5 // pred_region
      // Predicated region
      $region21: #{tpu_custom_call.1} parent=19 // pred_check
        %p120 = pneg %p64
      $region22: #{tpu_custom_call.1} parent=19 // pred_check_branch
        %122 = sbr.rel (%p120) target = $region24
      $region23: #{tpu_custom_call.1} parent=19 // pred_region
        %s123 = smul.u32 8, %s16
        %p124 = scmp.lt.s32.totalorder %s123, 15
        %s125 = scalar_select %p124, %s123, 15
        %p126 = scmp.lt.s32.totalorder %s17, 0
        %s127 = scalar_select %p126, %s17, 0
        %s128 = sadd.s32 %s127, %s125
        %s129 = smul.addr %s128, 8
        %s130 = scalar_lea.vmem %s1, %s129
        %s131 = smul.u32 8, %s16
      $region24: #{tpu_custom_call.1} parent=19 // pred_fallthru
        _
    $region20: #{tpu_custom_call.1} parent=5 // pred_fallthru
      _
    %p132 = scmp.le.s32.totalorder 1, %s9
    %p133 = scmp.lt.s32.totalorder %s9, 3
    %p134 = pnand %p132, %p133
    %p135 = pneg %p134
    // Predicated region
    $region25: #{tpu_custom_call.1} parent=5 // pred_check
      _
    $region26: #{tpu_custom_call.1} parent=5 // pred_check_branch
      %137 = sbr.rel (%p134) target = $region28
    $region27: #{tpu_custom_call.1} parent=5 // pred_region
      %s138 = ssub.s32 %s9, 1
      %p139 = pneg %p42
      %p140 = pneg %p39
      %s141 = smul.u32 8, %s18
      %p142 = scmp.lt.s32.totalorder %s141, 15
      %s143 = scalar_select %p142, %s141, 15
      %p144 = scmp.lt.s32.totalorder %s19, 0
      %s145 = scalar_select %p144, %s19, 0
      %s146 = sadd.s32 %s145, %s143
      %s147 = smul.addr %s146, 8
      %s148 = scalar_lea.vmem %s1, %s147
      %p149 = pneg %p70
      %p150 = pneg %p67
      %p151 = pneg %p98
      %p152 = pneg %p95
      %s153 = smul.u32 8, %s18
      %p154 = scmp.lt.s32.totalorder %s153, 15
      %s155 = scalar_select %p154, %s153, 15
      %p156 = scmp.lt.s32.totalorder %s19, 0
      %s157 = scalar_select %p156, %s19, 0
      %s158 = sadd.s32 %s157, %s155
      %s159 = smul.addr %s158, 8
      %s160 = scalar_lea.vmem %s2, %s159
      %s161 = smul.u32 8, %s18
      %p162 = scmp.lt.s32.totalorder %s161, 15
      %s163 = scalar_select %p162, %s161, 15
      %p164 = scmp.lt.s32.totalorder %s19, 0
      %s165 = scalar_select %p164, %s19, 0
      %s166 = sadd.s32 %s165, %s163
      %s167 = smul.addr %s166, 8
      %s168 = scalar_lea.vmem %s1, %s167
      %s169 = smul.u32 8, %s18
      %s170 = smul.u32 8, %s18
      %p171 = scmp.lt.s32.totalorder %s170, 15
      %s172 = scalar_select %p171, %s170, 15
      %p173 = scmp.lt.s32.totalorder %s19, 0
      %s174 = scalar_select %p173, %s19, 0
      %s175 = sadd.s32 %s174, %s172
      %s176 = smul.addr %s175, 8
      %s177 = scalar_lea.vmem %s2, %s176
      %s178 = smul.u32 8, %s18
      %s179 = sld [smem:[#allocation2]]
      %v180 = vld [vmem:[%s168] sm:$0xff]
      %v181 = vld [vmem:[%s168 + $0x8] sm:$0xff]
      %v182 = vld [vmem:[%s168 + $0x10] sm:$0xff]
      %v183 = vld [vmem:[%s168 + $0x18] sm:$0xff]
      %v184 = vld [vmem:[%s168 + $0x20] sm:$0xff]
      %v185 = vld [vmem:[%s168 + $0x28] sm:$0xff]
      %v186 = vld [vmem:[%s168 + $0x30] sm:$0xff]
      %v187 = vld [vmem:[%s168 + $0x38] sm:$0xff]
      %v188 = vstv %s179
      %v189 = vmul.f32 %v180, %v188
      %v190 = vmul.f32 %v181, %v188
      %v191 = vmul.f32 %v182, %v188
      %v192 = vmul.f32 %v183, %v188
      %v193 = vmul.f32 %v184, %v188
      %v194 = vmul.f32 %v185, %v188
      %v195 = vmul.f32 %v186, %v188
      %v196 = vmul.f32 %v187, %v188
      %vm197 = vcmask 130048
      %198 = vst.msk [vmem:[%s177] sm:$0xff] %vm197, %v189
      %199 = vst.msk [vmem:[%s177 + $0x8] sm:$0xff] %vm197, %v190
      %200 = vst.msk [vmem:[%s177 + $0x10] sm:$0xff] %vm197, %v191
      %201 = vst.msk [vmem:[%s177 + $0x18] sm:$0xff] %vm197, %v192
      %202 = vst.msk [vmem:[%s177 + $0x20] sm:$0xff] %vm197, %v193
      %203 = vst.msk [vmem:[%s177 + $0x28] sm:$0xff] %vm197, %v194
      %204 = vst.msk [vmem:[%s177 + $0x30] sm:$0xff] %vm197, %v195
      %205 = vst.msk [vmem:[%s177 + $0x38] sm:$0xff] %vm197, %v196
      %s206 = smul.u32 8, %s18
      %p207 = scmp.lt.s32.totalorder %s206, 15
      %s208 = scalar_select %p207, %s206, 15
      %p209 = scmp.lt.s32.totalorder %s19, 0
      %s210 = scalar_select %p209, %s19, 0
      %s211 = sadd.s32 %s210, %s208
      %s212 = smul.addr %s211, 8
      %s213 = scalar_lea.vmem %s2, %s212
      // Predicated region
      $region29: #{tpu_custom_call.1} parent=27 // pred_check
        %p214 = pneg %p95
      $region30: #{tpu_custom_call.1} parent=27 // pred_check_branch
        %216 = sbr.rel (%p214) target = $region32
      $region31: #{tpu_custom_call.1} parent=27 // pred_region
        %s217 = smul.u32 8, %s18
      $region32: #{tpu_custom_call.1} parent=27 // pred_fallthru
        _
    $region28: #{tpu_custom_call.1} parent=5 // pred_fallthru
      _
    %p218 = scmp.le.s32.totalorder 2, %s9
    // Predicated region
    $region33: #{tpu_custom_call.1} parent=5 // pred_check
      %p219 = pneg %p218
    $region34: #{tpu_custom_call.1} parent=5 // pred_check_branch
      %221 = sbr.rel (%p219) target = $region36
    $region35: #{tpu_custom_call.1} parent=5 // pred_region
      %s222 = ssub.s32 %s9, 2
      // Predicated region
      $region37: #{tpu_custom_call.1} parent=35 // pred_check
        %p223 = pneg %p101
      $region38: #{tpu_custom_call.1} parent=35 // pred_check_branch
        %225 = sbr.rel (%p223) target = $region40
      $region39: #{tpu_custom_call.1} parent=35 // pred_region
        %s226 = smul.u32 8, %s20
        %p227 = scmp.lt.s32.totalorder %s226, 15
        %s228 = scalar_select %p227, %s226, 15
        %p229 = scmp.lt.s32.totalorder %s21, 0
        %s230 = scalar_select %p229, %s21, 0
        %s231 = sadd.s32 %s230, %s228
        %s232 = smul.addr %s231, 8
        %s233 = scalar_lea.vmem %s2, %s232
      $region40: #{tpu_custom_call.1} parent=35 // pred_fallthru
        _
    $region36: #{tpu_custom_call.1} parent=5 // pred_fallthru
      _
  $region6: #{tpu_custom_call.1} parent=0 // loop_footer
    %s13 = sadd.s32 1, %s9
  $region7: #{tpu_custom_call.1} parent=0 // loop_footer_branch
    %8 = sbr.rel target = $region3
  $region8: #{tpu_custom_call.1} parent=0 // loop_exit
    _

</llo_original>
